<compile_context>
chip_gen: v6e
topology: v6e:2x2x1
jax: 0.10.0
libtpu: 0.0.40
codegen_flags: <defaults>
</compile_context>

<pallas_src>
import jax
import jax.numpy as jnp
from jax import lax
from jax.experimental import pallas as pl
from jax.experimental.pallas import tpu as pltpu


def mean_pred_kernel(pool_ref, w_ref, query_ref, out_ref):
    pool = pool_ref[...].astype(jnp.float32)     # (TB, P, D)
    query = query_ref[...].astype(jnp.float32)   # (TB, Q, D)
    w = w_ref[...]                               # (TB, P)  signed averaging weights, f32

    # Per-row inverse norms. rsqrt(0) is guarded to 0 so a zero-norm (e.g. masked /
    # tail-padded) pool or query row contributes 0 instead of NaN.
    # TODO(synk): an UNMASKED zero-norm pool row makes torch zero the whole class
    # average (NaN->0); here it just contributes 0 (degenerate input, documented).
    pn2 = jnp.sum(pool * pool, axis=-1)                        # (TB, P)   lanes = P
    scale = jnp.where(pn2 > 0.0, lax.rsqrt(pn2), 0.0) * w      # (TB, P)
    qn2 = jnp.sum(query * query, axis=-1, keepdims=True)       # (TB, Q, 1)
    inv_qn = jnp.where(qn2 > 0.0, lax.rsqrt(qn2), 0.0)         # (TB, Q, 1)

    # Fold the signed masked average into the contraction:
    #   v[t, d] = sum_p (w[t,p] / ||pool[t,p]||) * pool[t,p,d]
    # A batched (1,P)x(P,D) matmul — no (Q,P) metric tensor is ever materialized.
    v = jnp.einsum('tkp,tpd->tkd', scale[:, None, :], pool,
                   preferred_element_type=jnp.float32)         # (TB, 1, D)

    #   out[t, q] = (query[t,q,:] / ||query[t,q]||) . v[t,:]
    out_ref[...] = jnp.sum((query * inv_qn) * v, axis=-1)      # (TB, Q)  lanes = Q


def _choose_task_block(T, P, Q, D, in_bytes, task_block=None):
    """Pick the task-batch size and the scoped-VMEM limit per chip generation."""
    cdiv = lambda a, b: -(-a // b)
    try:
        vmem_cap = int(pltpu.get_tpu_info().vmem_capacity_bytes)
    except Exception:
        vmem_cap = 64 << 20            # conservative fallback: v7x per-TensorCore VMEM
    # Raise above the default scoped limit (16/32 MiB) but stay under physical.
    vmem_limit = int(min(vmem_cap * 7 // 8, 110 << 20))

    if task_block is None:
        # Bytes of VMEM one task costs: double-buffered DMA inputs/outputs plus the
        # in-kernel f32 intermediates (upcasts, q_hat, norms, v).
        per_task = 2 * ((P * D + Q * D) * in_bytes + (P + Q) * 4)           # pipelined I/O
        per_task += (2 * P * D + 2 * Q * D + 2 * P + 3 * Q + 2 * D) * 4     # f32 temporaries
        task_block = max(8, (vmem_limit // 2) // max(per_task, 1))
        if T > 8:
            # Keep >= ~4 grid steps so the DMA pipeline (and both TCs on v7x via the
            # "parallel" task axis) have work; never below the 8-sublane granule.
            task_block = min(task_block, max(8, cdiv(cdiv(T, 4), 8) * 8))

    tb = int(task_block)
    if tb >= T:
        tb = T                         # single full block (block == full array dims)
    else:
        tb = max(8, (tb // 8) * 8)     # sublane-aligned partial blocks
        if tb >= T:
            tb = T
    return tb, vmem_limit


def mean_pred_forward(pool, pool_labels, query, query_labels, mask, task_block=None):
    """Equivalent of meanPred(mode='cosine').forward({...}); query_labels unused."""
    del query_labels  # only used for verbose/AUC bookkeeping in the torch module
    T, P, D = pool.shape
    Q = query.shape[1]

    # Fold __getMask + __getAvg into one signed per-pool-sample weight:
    #   w[t,p] = pos[t,p]/num_pos[t] - neg[t,p]/num_neg[t]
    # (pos: mask!=0 & label!=0, neg: mask!=0 & label!=1; empty class -> term is 0,
    #  matching torch's masked_fill(isnan, 0)).
    lab = pool_labels.astype(jnp.int32)
    msk = mask.astype(jnp.int32)
    pos = jnp.logical_and(msk != 0, lab != 0).astype(jnp.float32)   # (T, P)
    neg = jnp.logical_and(msk != 0, lab != 1).astype(jnp.float32)   # (T, P)
    num_pos = jnp.sum(pos, axis=1, keepdims=True)
    num_neg = jnp.sum(neg, axis=1, keepdims=True)
    w = pos / jnp.maximum(num_pos, 1.0) - neg / jnp.maximum(num_neg, 1.0)   # (T, P) f32

    # Inputs are streamed in their incoming dtype (bf16 stays bf16) and upcast
    # in-kernel; the kernel is HBM-bound so fewer input bytes == faster.
    in_bytes = pool.dtype.itemsize
    TB, vmem_limit = _choose_task_block(T, P, Q, D, in_bytes, task_block)

    # No jnp.pad: the tail block (T % TB != 0) is handled by Pallas; padded-task
    # garbage never crosses task boundaries and tail output writes are clipped.
    grid = (pl.cdiv(T, TB),)

    # NOTE: output is (T, Q) with Q on lanes; for Q << 128 a transposed (Q, T) slab
    # with TB a multiple of 128 would make stores lane-dense, but the output is
    # negligible next to the input stream with the average folded in.
    out = pl.pallas_call(
        mean_pred_kernel,
        out_shape=jax.ShapeDtypeStruct((T, Q), jnp.float32),
        grid_spec=pltpu.PrefetchScalarGridSpec(
            num_scalar_prefetch=0,
            grid=grid,
            in_specs=[
                pl.BlockSpec((TB, P, D), lambda t: (t, 0, 0)),   # pool
                pl.BlockSpec((TB, P), lambda t: (t, 0)),         # signed weights (2-D, dense)
                pl.BlockSpec((TB, Q, D), lambda t: (t, 0, 0)),   # query
            ],
            out_specs=pl.BlockSpec((TB, Q), lambda t: (t, 0)),
        ),
        compiler_params=pltpu.CompilerParams(
            # Tasks are independent -> both TensorCores on v7x; harmless on v5e/v6e.
            # If profiling shows one v7x core idle, switch to pltpu.CORE_PARALLEL.
            dimension_semantics=("parallel",),
            vmem_limit_bytes=vmem_limit,
        ),
    )(pool, w, query)

    return out.reshape(T, Q, 1)   # torch returns (num_tasks, num_in_query, 1)


def mean_pred_reference(pool, pool_labels, query, mask):
    """Pure-JAX reference mirroring the torch code (cosine mode, mask given)."""
    pool = pool.astype(jnp.float32)
    query = query.astype(jnp.float32)
    pnorm = jnp.linalg.norm(pool, axis=2, keepdims=True)            # (T, P, 1)
    qnorm = jnp.linalg.norm(query, axis=2, keepdims=True)           # (T, Q, 1)
    deno = jnp.matmul(qnorm, jnp.transpose(pnorm, (0, 2, 1)),
                      precision=lax.Precision.HIGHEST)              # (T, Q, P)
    nume = jnp.matmul(query, jnp.transpose(pool, (0, 2, 1)),
                      precision=lax.Precision.HIGHEST)              # (T, Q, P)
    metric = nume / deno

    not_pos = jnp.logical_or(mask == 0, pool_labels == 0)[:, None, :]   # (T, 1, P)
    not_neg = jnp.logical_or(mask == 0, pool_labels == 1)[:, None, :]
    num_pos = jnp.sum(~not_pos, axis=2, keepdims=True).astype(jnp.float32)
    num_neg = jnp.sum(~not_neg, axis=2, keepdims=True).astype(jnp.float32)

    def avg(not_mask, num):
        met = jnp.where(not_mask, 0.0, metric)
        ave = jnp.sum(met, axis=2, keepdims=True) / num
        return jnp.where(jnp.isnan(ave), 0.0, ave)

    return avg(not_pos, num_pos) - avg(not_neg, num_neg)            # (T, Q, 1)


if __name__ == "__main__":
    T, P, Q, D = 16, 16, 8, 32  # num_tasks, pool size, query size, embedding dim

    key = jax.random.PRNGKey(0)
    k_pool, k_query, k_lab, k_qlab, k_mask = jax.random.split(key, 5)

    pool = jax.random.normal(k_pool, (T, P, D), dtype=jnp.float32)
    query = jax.random.normal(k_query, (T, Q, D), dtype=jnp.float32)
    pool_labels = jax.random.bernoulli(k_lab, 0.5, (T, P)).astype(jnp.int32)
    query_labels = jax.random.bernoulli(k_qlab, 0.5, (T, Q)).astype(jnp.int32)
    mask = jax.random.bernoulli(k_mask, 0.8, (T, P)).astype(jnp.int32)

    # Auto task_block: heuristic picks TB=8 here -> 2 grid steps (batched path).
    score = mean_pred_forward(pool, pool_labels, query, query_labels, mask)
    score = jax.block_until_ready(score)

    ref = mean_pred_reference(pool, pool_labels, query, mask)
    assert score.shape == (T, Q, 1)
    assert jnp.allclose(score, ref, atol=1e-5, rtol=1e-4), \
        float(jnp.max(jnp.abs(score - ref)))

    print("KERNEL_OK")
</pallas_src>

<mosaic_0001>
module attributes {stable_mosaic.version = 11 : i64} {
  func.func @mean_pred_kernel(%arg0: i32, %arg1: memref<8x16x32xf32, #tpu.memory_space<vmem>>, %arg2: memref<8x16xf32, #tpu.memory_space<vmem>>, %arg3: memref<8x8x32xf32, #tpu.memory_space<vmem>>, %arg4: memref<8x8xf32, #tpu.memory_space<vmem>>) attributes {dimension_semantics = [#tpu.dimension_semantics<parallel>], iteration_bounds = array<i64: 2>, scalar_prefetch = 0 : i64, scratch_operands = 0 : i64, tpu.core_type = #tpu.core_type<tc>, window_params = [{transform_indices = @transform_0, window_bounds = array<i64: 8, 16, 32>}, {transform_indices = @transform_1, window_bounds = array<i64: 8, 16>}, {transform_indices = @transform_2, window_bounds = array<i64: 8, 8, 32>}, {transform_indices = @transform_3, window_bounds = array<i64: 8, 8>}]} {
    %c0 = arith.constant 0 : index
    %c0_0 = arith.constant 0 : index
    %c0_1 = arith.constant 0 : index
    %0 = vector.load %arg1[%c0, %c0_0, %c0_1] : memref<8x16x32xf32, #tpu.memory_space<vmem>>, vector<8x16x32xf32>
    %c0_2 = arith.constant 0 : index
    %c0_3 = arith.constant 0 : index
    %c0_4 = arith.constant 0 : index
    %1 = vector.load %arg3[%c0_2, %c0_3, %c0_4] : memref<8x8x32xf32, #tpu.memory_space<vmem>>, vector<8x8x32xf32>
    %c0_5 = arith.constant 0 : index
    %c0_6 = arith.constant 0 : index
    %2 = vector.load %arg2[%c0_5, %c0_6] : memref<8x16xf32, #tpu.memory_space<vmem>>, vector<8x16xf32>
    %3 = arith.mulf %0, %0 : vector<8x16x32xf32>
    %cst = arith.constant dense<0.000000e+00> : vector<8x16xf32>
    %4 = vector.multi_reduction <add>, %3, %cst [2] : vector<8x16x32xf32> to vector<8x16xf32>
    %cst_7 = arith.constant 0.000000e+00 : f32
    %5 = vector.broadcast %cst_7 : f32 to vector<8x16xf32>
    %6 = arith.cmpf ogt, %4, %5 : vector<8x16xf32>
    %7 = math.rsqrt %4 : vector<8x16xf32>
    %cst_8 = arith.constant 0.000000e+00 : f32
    %8 = vector.broadcast %cst_8 : f32 to vector<8x16xf32>
    %9 = arith.select %6, %7, %8 : vector<8x16xi1>, vector<8x16xf32>
    %10 = arith.mulf %9, %2 : vector<8x16xf32>
    %11 = arith.mulf %1, %1 : vector<8x8x32xf32>
    %cst_9 = arith.constant dense<0.000000e+00> : vector<8x8xf32>
    %12 = vector.multi_reduction <add>, %11, %cst_9 [2] : vector<8x8x32xf32> to vector<8x8xf32>
    %13 = vector.shape_cast %12 : vector<8x8xf32> to vector<8x8x1xf32>
    %cst_10 = arith.constant 0.000000e+00 : f32
    %14 = vector.broadcast %cst_10 : f32 to vector<8x8x1xf32>
    %15 = arith.cmpf ogt, %13, %14 : vector<8x8x1xf32>
    %16 = math.rsqrt %13 : vector<8x8x1xf32>
    %cst_11 = arith.constant 0.000000e+00 : f32
    %17 = vector.broadcast %cst_11 : f32 to vector<8x8x1xf32>
    %18 = arith.select %15, %16, %17 : vector<8x8x1xi1>, vector<8x8x1xf32>
    %19 = vector.shape_cast %10 : vector<8x16xf32> to vector<8x1x16xf32>
    "tpu.trace_start"() <{level = 10 : i32, message = "tkp,tpd->tkd"}> : () -> ()
    %cst_12 = arith.constant dense<0.000000e+00> : vector<8x1x32xf32>
    %20 = tpu.matmul %19, %0, %cst_12 {dimension_numbers = #tpu.dot_dimension_numbers<[2], [1], [1], [2], [0, 0, 0, 1, 1, 2], [0], [0]>} : vector<8x1x16xf32>, vector<8x16x32xf32>, vector<8x1x32xf32> -> vector<8x1x32xf32>
    "tpu.trace_stop"() : () -> ()
    %21 = vector.broadcast %18 : vector<8x8x1xf32> to vector<8x8x32xf32>
    %22 = arith.mulf %1, %21 : vector<8x8x32xf32>
    %23 = vector.broadcast %20 : vector<8x1x32xf32> to vector<8x8x32xf32>
    %24 = arith.mulf %22, %23 : vector<8x8x32xf32>
    %cst_13 = arith.constant dense<0.000000e+00> : vector<8x8xf32>
    %25 = vector.multi_reduction <add>, %24, %cst_13 [2] : vector<8x8x32xf32> to vector<8x8xf32>
    %c0_14 = arith.constant 0 : index
    %c0_15 = arith.constant 0 : index
    %26 = vector.load %arg4[%c0_14, %c0_15] : memref<8x8xf32, #tpu.memory_space<vmem>>, vector<8x8xf32>
    tpu.vector_store %arg4[%c0_14, %c0_15], %25 {strides = array<i32>} : memref<8x8xf32, #tpu.memory_space<vmem>>, vector<8x8xf32>,
    return
  }
  func.func @transform_0(%arg0: i32) -> (i32, i32, i32) {
    %c0_i32 = arith.constant 0 : i32
    %c0_i32_0 = arith.constant 0 : i32
    %c0_i32_1 = arith.constant 0 : i32
    return %arg0, %c0_i32, %c0_i32_0 : i32, i32, i32
  }
  func.func @transform_1(%arg0: i32) -> (i32, i32) {
    %c0_i32 = arith.constant 0 : i32
    %c0_i32_0 = arith.constant 0 : i32
    return %arg0, %c0_i32 : i32, i32
  }
  func.func @transform_2(%arg0: i32) -> (i32, i32, i32) {
    %c0_i32 = arith.constant 0 : i32
    %c0_i32_0 = arith.constant 0 : i32
    %c0_i32_1 = arith.constant 0 : i32
    return %arg0, %c0_i32, %c0_i32_0 : i32, i32, i32
  }
  func.func @transform_3(%arg0: i32) -> (i32, i32) {
    %c0_i32 = arith.constant 0 : i32
    %c0_i32_0 = arith.constant 0 : i32
    return %arg0, %c0_i32 : i32, i32
  }
}

</mosaic_0001>

<llo_original>
// kernel: tpu_custom_call.1
$region0: #{tpu_custom_call.1}
  #allocation0 [shape = 'u32[]', space=smem, size = 0x4, offset = 0x4, fixed_abs, tag = 'smem constant byte address 0x4 - core index']
  #allocation1 [shape = 'u32[144,128]{1,0:T(1,128)}', space=vmem, size = 0x12000, scoped, tag = 'internal scratch']
  %s0 = inlined_call_operand.hbm [shape: f32[16,16,32], index: 0, kind: input, shape index: {}]
  %s1 = inlined_call_operand.hbm [shape: f32[16,16], index: 1, kind: input, shape index: {}]
  %s2 = inlined_call_operand.hbm [shape: f32[16,8,32], index: 2, kind: input, shape index: {}]
  %s3 = inlined_call_operand.vmem [shape: f32[16,8], index: 3, kind: output, shape index: {}]
  %s4 = sld [smem:[#allocation0]]
  $region57: #{tpu_custom_call.1} parent=0
    _
  %s6 = ssub.s32 1, %s4
  %s7 = scalar_select 0, %s6, %s4
  $region1: #{tpu_custom_call.1} parent=0
    #allocation2 [shape = 'u8[131072]{0}', space=vmem, size = 0x20000, scoped, tag = 'input window, operand 0']
    #allocation3 [shape = 's32[2]{0}', space=sflag, size = 0x8, scoped, tag = 'scoped memory for tpu_custom_call.1']
    #allocation4 [shape = 'u8[8192]{0}', space=vmem, size = 0x2000, scoped, tag = 'input window, operand 1']
    #allocation5 [shape = 's32[2]{0}', space=sflag, size = 0x8, scoped, tag = 'scoped memory for tpu_custom_call.1']
    #allocation6 [shape = 'u8[65536]{0}', space=vmem, size = 0x10000, scoped, tag = 'input window, operand 2']
    %8 = vsyncpa [#allocation3], 0
    %s9 = scalar_lea.sflag [#allocation3], 1
    %10 = vsyncpa %s9, 0
    %11 = vsyncpa [#allocation5], 0
    %s12 = scalar_lea.sflag [#allocation5], 1
    %13 = vsyncpa %s12, 0
    loop: start=0, step=1, limit=4
    $region2: #{tpu_custom_call.1} parent=1 // loop_pre_header
      _
    $region3: #{tpu_custom_call.1} parent=1 // loop_header
      %s15 = sphi 0, %s19
      %p16 = scmp.ge.s32.totalorder %s15, 4
      %s25 = sphi 0, %s27
      %s28 = sphi 0, %s25
      %s29 = sphi 0, %s28
      %s45 = sphi 0, %s29
      %s51 = sphi 0, %s53
      %s54 = sphi 0, %s51
      %s55 = sphi 0, %s54
      %s71 = sphi 0, %s55
      %s77 = sphi 0, %s79
      %s80 = sphi 0, %s77
      %s81 = sphi 0, %s80
      %s97 = sphi 0, %s81
      %s103 = sphi 0, %s105
      %s106 = sphi 0, %s103
      %s107 = sphi 0, %s106
      %s123 = sphi 0, %s107
    $region4: #{tpu_custom_call.1} parent=1 // loop_header_branch
      %18 = sbr.rel (%p16) target = $region8
    $region5: #{tpu_custom_call.1} parent=1 // loop_body
      %s20 = ssub.s32 %s15, 1
      %s21 = ssub.s32 %s15, 2
      %s22 = sadd.s32 %s15, 1
      %s23 = ssub.s32 %s15, %s22
      %p24 = scmp.eq.s32.totalorder %s23, 0
      %s26 = sadd.s32 %s25, 1
      %s27 = scalar_select %p24, %s25, %s26
      %p30 = pneg %p24
      %p31 = scmp.eq.s32.totalorder %s15, 1
      %p32 = por %p30, %p31
      %p33 = scmp.ne.s32.totalorder %s25, %s28
      %p34 = scmp.eq.s32.totalorder %s15, 0
      %p35 = por %p33, %p34
      %p36 = scmp.ne.s32.totalorder %s25, %s28
      %p37 = scmp.eq.s32.totalorder %s20, 1
      %p38 = por %p36, %p37
      %p39 = scmp.ne.s32.totalorder %s28, %s29
      %p40 = scmp.eq.s32.totalorder %s20, 0
      %p41 = por %p39, %p40
      %p42 = scmp.ne.s32.totalorder %s28, %s29
      %p43 = scmp.eq.s32.totalorder %s21, 1
      %p44 = por %p42, %p43
      %p46 = scmp.ne.s32.totalorder %s29, %s45
      %p47 = scmp.eq.s32.totalorder %s21, 0
      %p48 = por %p46, %p47
      %s49 = ssub.s32 %s15, %s22
      %p50 = scmp.eq.s32.totalorder %s49, 0
      %s52 = sadd.s32 %s51, 1
      %s53 = scalar_select %p50, %s51, %s52
      %p56 = pneg %p50
      %p57 = scmp.eq.s32.totalorder %s15, 1
      %p58 = por %p56, %p57
      %p59 = scmp.ne.s32.totalorder %s51, %s54
      %p60 = scmp.eq.s32.totalorder %s15, 0
      %p61 = por %p59, %p60
      %p62 = scmp.ne.s32.totalorder %s51, %s54
      %p63 = scmp.eq.s32.totalorder %s20, 1
      %p64 = por %p62, %p63
      %p65 = scmp.ne.s32.totalorder %s54, %s55
      %p66 = scmp.eq.s32.totalorder %s20, 0
      %p67 = por %p65, %p66
      %p68 = scmp.ne.s32.totalorder %s54, %s55
      %p69 = scmp.eq.s32.totalorder %s21, 1
      %p70 = por %p68, %p69
      %p72 = scmp.ne.s32.totalorder %s55, %s71
      %p73 = scmp.eq.s32.totalorder %s21, 0
      %p74 = por %p72, %p73
      %s75 = ssub.s32 %s15, %s22
      %p76 = scmp.eq.s32.totalorder %s75, 0
      %s78 = sadd.s32 %s77, 1
      %s79 = scalar_select %p76, %s77, %s78
      %p82 = pneg %p76
      %p83 = scmp.eq.s32.totalorder %s15, 1
      %p84 = por %p82, %p83
      %p85 = scmp.ne.s32.totalorder %s77, %s80
      %p86 = scmp.eq.s32.totalorder %s15, 0
      %p87 = por %p85, %p86
      %p88 = scmp.ne.s32.totalorder %s77, %s80
      %p89 = scmp.eq.s32.totalorder %s20, 1
      %p90 = por %p88, %p89
      %p91 = scmp.ne.s32.totalorder %s80, %s81
      %p92 = scmp.eq.s32.totalorder %s20, 0
      %p93 = por %p91, %p92
      %p94 = scmp.ne.s32.totalorder %s80, %s81
      %p95 = scmp.eq.s32.totalorder %s21, 1
      %p96 = por %p94, %p95
      %p98 = scmp.ne.s32.totalorder %s81, %s97
      %p99 = scmp.eq.s32.totalorder %s21, 0
      %p100 = por %p98, %p99
      %s101 = ssub.s32 %s15, %s22
      %p102 = scmp.eq.s32.totalorder %s101, 0
      %s104 = sadd.s32 %s103, 1
      %s105 = scalar_select %p102, %s103, %s104
      %p108 = pneg %p102
      %p109 = scmp.eq.s32.totalorder %s15, 1
      %p110 = por %p108, %p109
      %p111 = scmp.ne.s32.totalorder %s103, %s106
      %p112 = scmp.eq.s32.totalorder %s15, 0
      %p113 = por %p111, %p112
      %p114 = scmp.ne.s32.totalorder %s103, %s106
      %p115 = scmp.eq.s32.totalorder %s20, 1
      %p116 = por %p114, %p115
      %p117 = scmp.ne.s32.totalorder %s106, %s107
      %p118 = scmp.eq.s32.totalorder %s20, 0
      %p119 = por %p117, %p118
      %p120 = scmp.ne.s32.totalorder %s106, %s107
      %p121 = scmp.eq.s32.totalorder %s21, 1
      %p122 = por %p120, %p121
      %p124 = scmp.ne.s32.totalorder %s107, %s123
      %p125 = scmp.eq.s32.totalorder %s21, 0
      %p126 = por %p124, %p125
      %p127 = scmp.le.s32.totalorder 1, %s15
      %p128 = scmp.lt.s32.totalorder %s15, 3
      %p129 = pnand %p127, %p128
      %p130 = pneg %p129
      // Predicated region
      $region9: #{tpu_custom_call.1} parent=5 // pred_check
        _
      $region10: #{tpu_custom_call.1} parent=5 // pred_check_branch
        %132 = sbr.rel (%p129) target = $region12
      $region11: #{tpu_custom_call.1} parent=5 // pred_region
        %s133 = ssub.s32 %s15, 1
      $region12: #{tpu_custom_call.1} parent=5 // pred_fallthru
        _
      %p134 = scmp.lt.s32.totalorder %s15, 2
      // Predicated region
      $region13: #{tpu_custom_call.1} parent=5 // pred_check
        %p135 = pneg %p134
      $region14: #{tpu_custom_call.1} parent=5 // pred_check_branch
        %137 = sbr.rel (%p135) target = $region16
      $region15: #{tpu_custom_call.1} parent=5 // pred_region
        // Predicated region
        $region17: #{tpu_custom_call.1} parent=15 // pred_check
          %p138 = pneg %p35
        $region18: #{tpu_custom_call.1} parent=15 // pred_check_branch
          %140 = sbr.rel (%p138) target = $region20
        $region19: #{tpu_custom_call.1} parent=15 // pred_region
          %s141 = sand.u32 %s25, 1
          %s142 = scalar_lea.sflag [#allocation3], %s141
          %s143 = sand.u32 %s25, 1
          %s144 = smul.addr %s143, 128
          %s145 = scalar_lea.vmem [#allocation2], %s144
          %s146 = smul.u32 8, %s15
          %s148 = ssub.s32 2048, 2048
          %149 = vsyncadd %s142, %s148
          %s150 = smul.addr %s146, 2
          %s151 = smul.addr %s150, 128
          %s152 = scalar_lea.hbm %s0, %s151
          %s153 = sshll.u32 %s145, 4
          %s154 = int_to_ptr.vmem [resolvable:$true] %s153
          %159 = dma.hbm_to_vmem [thread:$0]  %s152, 2048, %s154, %s142, 128, 128, 8
        $region20: #{tpu_custom_call.1} parent=15 // pred_fallthru
          _
        // Predicated region
        $region21: #{tpu_custom_call.1} parent=15 // pred_check
          %p160 = pneg %p61
        $region22: #{tpu_custom_call.1} parent=15 // pred_check_branch
          %162 = sbr.rel (%p160) target = $region24
        $region23: #{tpu_custom_call.1} parent=15 // pred_region
          %s163 = sand.u32 %s15, 1
          %s164 = scalar_lea.sflag [#allocation5], %s163
          %s165 = sand.u32 %s51, 1
          %s166 = smul.addr %s165, 8
          %s167 = scalar_lea.vmem [#allocation4], %s166
          %s169 = ssub.s32 128, 128
          %170 = vsyncadd %s164, %s169
          %s171 = smul.addr %s15, 128
          %s172 = scalar_lea.hbm %s1, %s171
          %s174 = sshll.u32 %s167, 4
          %s175 = int_to_ptr.vmem [resolvable:$true] %s174
          %177 = dma.hbm_to_vmem [thread:$0]  %s172, 128, %s175, %s164
        $region24: #{tpu_custom_call.1} parent=15 // pred_fallthru
          _
        // Predicated region
        $region25: #{tpu_custom_call.1} parent=15 // pred_check
          %p178 = pneg %p87
        $region26: #{tpu_custom_call.1} parent=15 // pred_check_branch
          %180 = sbr.rel (%p178) target = $region28
        $region27: #{tpu_custom_call.1} parent=15 // pred_region
          %s181 = sand.u32 %s15, 1
          %s182 = scalar_lea.sflag [#allocation5], %s181
          %s183 = sand.u32 %s77, 1
          %s184 = smul.addr %s183, 64
          %s185 = scalar_lea.vmem [#allocation6], %s184
          %s186 = smul.u32 8, %s15
          %s188 = ssub.s32 1024, 1024
          %189 = vsyncadd %s182, %s188
          %s190 = smul.addr %s186, 128
          %s191 = scalar_lea.hbm %s2, %s190
          %s192 = sshll.u32 %s185, 4
          %s193 = int_to_ptr.vmem [resolvable:$true] %s192
          %198 = dma.hbm_to_vmem [thread:$0]  %s191, 1024, %s193, %s182, 128, 128, 8
        $region28: #{tpu_custom_call.1} parent=15 // pred_fallthru
          _
      $region16: #{tpu_custom_call.1} parent=5 // pred_fallthru
        _
      %p199 = scmp.le.s32.totalorder 1, %s15
      %p200 = scmp.lt.s32.totalorder %s15, 3
      %p201 = pnand %p199, %p200
      %p202 = pneg %p201
      // Predicated region
      $region29: #{tpu_custom_call.1} parent=5 // pred_check
        _
      $region30: #{tpu_custom_call.1} parent=5 // pred_check_branch
        %204 = sbr.rel (%p201) target = $region32
      $region31: #{tpu_custom_call.1} parent=5 // pred_region
        %s205 = ssub.s32 %s15, 1
        %s206 = sand.u32 %s28, 1
        %s207 = scalar_lea.sflag [#allocation3], %s206
        %s208 = sand.u32 %s28, 1
        %s209 = smul.addr %s208, 128
        %s210 = scalar_lea.vmem [#allocation2], %s209
        // Predicated region
        $region33: #{tpu_custom_call.1} parent=31 // pred_check
          %p211 = pneg %p41
        $region34: #{tpu_custom_call.1} parent=31 // pred_check_branch
          %213 = sbr.rel (%p211) target = $region36
        $region35: #{tpu_custom_call.1} parent=31 // pred_region
          %214 = dma.done %s207, 2048
        $region36: #{tpu_custom_call.1} parent=31 // pred_fallthru
          _
        %s215 = sand.u32 %s20, 1
        %s216 = scalar_lea.sflag [#allocation5], %s215
        %s217 = sand.u32 %s54, 1
        %s218 = smul.addr %s217, 8
        %s219 = scalar_lea.vmem [#allocation4], %s218
        // Predicated region
        $region37: #{tpu_custom_call.1} parent=31 // pred_check
          %p220 = pneg %p67
        $region38: #{tpu_custom_call.1} parent=31 // pred_check_branch
          %222 = sbr.rel (%p220) target = $region40
        $region39: #{tpu_custom_call.1} parent=31 // pred_region
          %223 = dma.done %s216, 128
        $region40: #{tpu_custom_call.1} parent=31 // pred_fallthru
          _
        %s224 = sand.u32 %s20, 1
        %s225 = scalar_lea.sflag [#allocation5], %s224
        %s226 = sand.u32 %s80, 1
        %s227 = smul.addr %s226, 64
        %s228 = scalar_lea.vmem [#allocation6], %s227
        // Predicated region
        $region41: #{tpu_custom_call.1} parent=31 // pred_check
          %p229 = pneg %p93
        $region42: #{tpu_custom_call.1} parent=31 // pred_check_branch
          %231 = sbr.rel (%p229) target = $region44
        $region43: #{tpu_custom_call.1} parent=31 // pred_region
          %232 = dma.done %s225, 1024
        $region44: #{tpu_custom_call.1} parent=31 // pred_fallthru
          _
        %s233 = sand.u32 %s28, 1
        %s234 = scalar_lea.sflag [#allocation3], %s233
        %s235 = sand.u32 %s28, 1
        %s236 = smul.addr %s235, 128
        %s237 = scalar_lea.vmem [#allocation2], %s236
        %p238 = pneg %p41
        %p239 = pneg %p38
        %s240 = sand.u32 %s20, 1
        %s241 = scalar_lea.sflag [#allocation5], %s240
        %s242 = sand.u32 %s54, 1
        %s243 = smul.addr %s242, 8
        %s244 = scalar_lea.vmem [#allocation4], %s243
        %p245 = pneg %p67
        %p246 = pneg %p64
        %s247 = sand.u32 %s20, 1
        %s248 = scalar_lea.sflag [#allocation5], %s247
        %s249 = sand.u32 %s80, 1
        %s250 = smul.addr %s249, 64
        %s251 = scalar_lea.vmem [#allocation6], %s250
        %p252 = pneg %p93
        %p253 = pneg %p90
        %p254 = pneg %p119
        %p255 = pneg %p116
        %p256 = scmp.lt.s32.totalorder %s20, 1
        %s257 = scalar_select %p256, %s20, 1
        %s258 = smul.addr %s257, 8
        %s259 = scalar_lea.vmem %s3, %s258
        %s260 = smul.u32 8, %s20
        %s261 = smul.u32 8, %s20
        %p262 = scmp.lt.s32.totalorder %s20, 1
        %s263 = scalar_select %p262, %s20, 1
        %s264 = smul.addr %s263, 8
        %s265 = scalar_lea.vmem %s3, %s264
        %v266 = vld [vmem:[%s210] sm:$0xff]
        %v267 = vld [vmem:[%s210 + $0x8] sm:$0xff]
        %v268 = vld [vmem:[%s210 + $0x10] sm:$0xff]
        %v269 = vld [vmem:[%s210 + $0x18] sm:$0xff]
        %v270 = vld [vmem:[%s210 + $0x20] sm:$0xff]
        %v271 = vld [vmem:[%s210 + $0x28] sm:$0xff]
        %v272 = vld [vmem:[%s210 + $0x30] sm:$0xff]
        %v273 = vld [vmem:[%s210 + $0x38] sm:$0xff]
        %v274 = vld [vmem:[%s210 + $0x40] sm:$0xff]
        %v275 = vld [vmem:[%s210 + $0x48] sm:$0xff]
        %v276 = vld [vmem:[%s210 + $0x50] sm:$0xff]
        %v277 = vld [vmem:[%s210 + $0x58] sm:$0xff]
        %v278 = vld [vmem:[%s210 + $0x60] sm:$0xff]
        %v279 = vld [vmem:[%s210 + $0x68] sm:$0xff]
        %v280 = vld [vmem:[%s210 + $0x70] sm:$0xff]
        %v281 = vld [vmem:[%s210 + $0x78] sm:$0xff]
        %v282 = vld [vmem:[%s228] sm:$0xff]
        %v283 = vld [vmem:[%s228 + $0x8] sm:$0xff]
        %v284 = vld [vmem:[%s228 + $0x10] sm:$0xff]
        %v285 = vld [vmem:[%s228 + $0x18] sm:$0xff]
        %v286 = vld [vmem:[%s228 + $0x20] sm:$0xff]
        %v287 = vld [vmem:[%s228 + $0x28] sm:$0xff]
        %v288 = vld [vmem:[%s228 + $0x30] sm:$0xff]
        %v289 = vld [vmem:[%s228 + $0x38] sm:$0xff]
        %v290 = vld [vmem:[%s219] sm:$0xff]
        %v291 = vmul.f32 %v266, %v266
        %v292 = vmul.f32 %v267, %v267
        %v293 = vmul.f32 %v268, %v268
        %v294 = vmul.f32 %v269, %v269
        %v295 = vmul.f32 %v270, %v270
        %v296 = vmul.f32 %v271, %v271
        %v297 = vmul.f32 %v272, %v272
        %v298 = vmul.f32 %v273, %v273
        %v299 = vmul.f32 %v274, %v274
        %v300 = vmul.f32 %v275, %v275
        %v301 = vmul.f32 %v276, %v276
        %v302 = vmul.f32 %v277, %v277
        %v303 = vmul.f32 %v278, %v278
        %v304 = vmul.f32 %v279, %v279
        %v305 = vmul.f32 %v280, %v280
        %v306 = vmul.f32 %v281, %v281
        %vm307 = vcmask 261120
        %v308 = vsel %vm307, %v291, 0.0
        %309 = vadd.xlane.f32.xlu0 %v308
        %v310 = vpop.xlane.xlu0 %309
        %v311 = vsel %vm307, %v292, 0.0
        %312 = vadd.xlane.f32.xlu0 %v311
        %v313 = vpop.xlane.xlu0 %312
        %v314 = vsel %vm307, %v293, 0.0
        %315 = vadd.xlane.f32.xlu0 %v314
        %v316 = vpop.xlane.xlu0 %315
        %v317 = vsel %vm307, %v294, 0.0
        %318 = vadd.xlane.f32.xlu0 %v317
        %v319 = vpop.xlane.xlu0 %318
        %v320 = vsel %vm307, %v295, 0.0
        %321 = vadd.xlane.f32.xlu0 %v320
        %v322 = vpop.xlane.xlu0 %321
        %v323 = vsel %vm307, %v296, 0.0
        %324 = vadd.xlane.f32.xlu0 %v323
        %v325 = vpop.xlane.xlu0 %324
        %v326 = vsel %vm307, %v297, 0.0
        %327 = vadd.xlane.f32.xlu0 %v326
        %v328 = vpop.xlane.xlu0 %327
        %v329 = vsel %vm307, %v298, 0.0
        %330 = vadd.xlane.f32.xlu0 %v329
        %v331 = vpop.xlane.xlu0 %330
        %v332 = vsel %vm307, %v299, 0.0
        %333 = vadd.xlane.f32.xlu0 %v332
        %v334 = vpop.xlane.xlu0 %333
        %v335 = vsel %vm307, %v300, 0.0
        %336 = vadd.xlane.f32.xlu0 %v335
        %v337 = vpop.xlane.xlu0 %336
        %v338 = vsel %vm307, %v301, 0.0
        %339 = vadd.xlane.f32.xlu0 %v338
        %v340 = vpop.xlane.xlu0 %339
        %v341 = vsel %vm307, %v302, 0.0
        %342 = vadd.xlane.f32.xlu0 %v341
        %v343 = vpop.xlane.xlu0 %342
        %v344 = vsel %vm307, %v303, 0.0
        %345 = vadd.xlane.f32.xlu0 %v344
        %v346 = vpop.xlane.xlu0 %345
        %v347 = vsel %vm307, %v304, 0.0
        %348 = vadd.xlane.f32.xlu0 %v347
        %v349 = vpop.xlane.xlu0 %348
        %v350 = vsel %vm307, %v305, 0.0
        %351 = vadd.xlane.f32.xlu0 %v350
        %v352 = vpop.xlane.xlu0 %351
        %v353 = vsel %vm307, %v306, 0.0
        %354 = vadd.xlane.f32.xlu0 %v353
        %v355 = vpop.xlane.xlu0 %354
        %vm356 = vcmp.gt.f32.partialorder %v310, 0.0
        %vm357 = vcmp.gt.f32.partialorder %v313, 0.0
        %vm358 = vcmp.gt.f32.partialorder %v316, 0.0
        %vm359 = vcmp.gt.f32.partialorder %v319, 0.0
        %vm360 = vcmp.gt.f32.partialorder %v322, 0.0
        %vm361 = vcmp.gt.f32.partialorder %v325, 0.0
        %vm362 = vcmp.gt.f32.partialorder %v328, 0.0
        %vm363 = vcmp.gt.f32.partialorder %v331, 0.0
        %vm364 = vcmp.gt.f32.partialorder %v334, 0.0
        %vm365 = vcmp.gt.f32.partialorder %v337, 0.0
        %vm366 = vcmp.gt.f32.partialorder %v340, 0.0
        %vm367 = vcmp.gt.f32.partialorder %v343, 0.0
        %vm368 = vcmp.gt.f32.partialorder %v346, 0.0
        %vm369 = vcmp.gt.f32.partialorder %v349, 0.0
        %vm370 = vcmp.gt.f32.partialorder %v352, 0.0
        %vm371 = vcmp.gt.f32.partialorder %v355, 0.0
        %v372 = vrsqrt.pop %v310
        %v373 = vrsqrt.pop %v313
        %v374 = vrsqrt.pop %v316
        %v375 = vrsqrt.pop %v319
        %v376 = vrsqrt.pop %v322
        %v377 = vrsqrt.pop %v325
        %v378 = vrsqrt.pop %v328
        %v379 = vrsqrt.pop %v331
        %v380 = vrsqrt.pop %v334
        %v381 = vrsqrt.pop %v337
        %v382 = vrsqrt.pop %v340
        %v383 = vrsqrt.pop %v343
        %v384 = vrsqrt.pop %v346
        %v385 = vrsqrt.pop %v349
        %v386 = vrsqrt.pop %v352
        %v387 = vrsqrt.pop %v355
        %v388 = vsel %vm356, %v372, 0.0
        %v389 = vsel %vm357, %v373, 0.0
        %v390 = vsel %vm358, %v374, 0.0
        %v391 = vsel %vm359, %v375, 0.0
        %v392 = vsel %vm360, %v376, 0.0
        %v393 = vsel %vm361, %v377, 0.0
        %v394 = vsel %vm362, %v378, 0.0
        %v395 = vsel %vm363, %v379, 0.0
        %v396 = vsel %vm364, %v380, 0.0
        %v397 = vsel %vm365, %v381, 0.0
        %v398 = vsel %vm366, %v382, 0.0
        %v399 = vsel %vm367, %v383, 0.0
        %v400 = vsel %vm368, %v384, 0.0
        %v401 = vsel %vm369, %v385, 0.0
        %v402 = vsel %vm370, %v386, 0.0
        %v403 = vsel %vm371, %v387, 0.0
        %v405 = vlaneseq
        %v406 = vshrl.u32 %v405, 7
        %v407 = vsub.s32 0, %v406
        %v408 = vrot.slane %v290, %v407
        %410 = vbcast.lane.b32.xlu0 %v408, 256
        %v411 = vpop.permute.xlu0 %410
        %s413 = sor.u32 256, 8
        %414 = vbcast.lane.b32.xlu0 %v408, %s413
        %v415 = vpop.permute.xlu0 %414
        %v416 = vlaneseq
        %v417 = vshrl.u32 %v416, 7
        %v418 = vsub.s32 1, %v417
        %v419 = vrot.slane %v290, %v418
        %421 = vbcast.lane.b32.xlu0 %v419, 256
        %v422 = vpop.permute.xlu0 %421
        %s424 = sor.u32 256, 8
        %425 = vbcast.lane.b32.xlu0 %v419, %s424
        %v426 = vpop.permute.xlu0 %425
        %v427 = vlaneseq
        %v428 = vshrl.u32 %v427, 7
        %v429 = vsub.s32 2, %v428
        %v430 = vrot.slane %v290, %v429
        %432 = vbcast.lane.b32.xlu0 %v430, 256
        %v433 = vpop.permute.xlu0 %432
        %s435 = sor.u32 256, 8
        %436 = vbcast.lane.b32.xlu0 %v430, %s435
        %v437 = vpop.permute.xlu0 %436
        %v438 = vlaneseq
        %v439 = vshrl.u32 %v438, 7
        %v440 = vsub.s32 3, %v439
        %v441 = vrot.slane %v290, %v440
        %443 = vbcast.lane.b32.xlu0 %v441, 256
        %v444 = vpop.permute.xlu0 %443
        %s446 = sor.u32 256, 8
        %447 = vbcast.lane.b32.xlu0 %v441, %s446
        %v448 = vpop.permute.xlu0 %447
        %v449 = vlaneseq
        %v450 = vshrl.u32 %v449, 7
        %v451 = vsub.s32 4, %v450
        %v452 = vrot.slane %v290, %v451
        %454 = vbcast.lane.b32.xlu0 %v452, 256
        %v455 = vpop.permute.xlu0 %454
        %s457 = sor.u32 256, 8
        %458 = vbcast.lane.b32.xlu0 %v452, %s457
        %v459 = vpop.permute.xlu0 %458
        %v460 = vlaneseq
        %v461 = vshrl.u32 %v460, 7
        %v462 = vsub.s32 5, %v461
        %v463 = vrot.slane %v290, %v462
        %465 = vbcast.lane.b32.xlu0 %v463, 256
        %v466 = vpop.permute.xlu0 %465
        %s468 = sor.u32 256, 8
        %469 = vbcast.lane.b32.xlu0 %v463, %s468
        %v470 = vpop.permute.xlu0 %469
        %v471 = vlaneseq
        %v472 = vshrl.u32 %v471, 7
        %v473 = vsub.s32 6, %v472
        %v474 = vrot.slane %v290, %v473
        %476 = vbcast.lane.b32.xlu0 %v474, 256
        %v477 = vpop.permute.xlu0 %476
        %s479 = sor.u32 256, 8
        %480 = vbcast.lane.b32.xlu0 %v474, %s479
        %v481 = vpop.permute.xlu0 %480
        %v482 = vlaneseq
        %v483 = vshrl.u32 %v482, 7
        %v484 = vsub.s32 7, %v483
        %v485 = vrot.slane %v290, %v484
        %487 = vbcast.lane.b32.xlu0 %v485, 256
        %v488 = vpop.permute.xlu0 %487
        %s490 = sor.u32 256, 8
        %491 = vbcast.lane.b32.xlu0 %v485, %s490
        %v492 = vpop.permute.xlu0 %491
        %v509 = vmul.f32 %v388, %v411
        %v510 = vmul.f32 %v389, %v415
        %v511 = vmul.f32 %v390, %v422
        %v512 = vmul.f32 %v391, %v426
        %v513 = vmul.f32 %v392, %v433
        %v514 = vmul.f32 %v393, %v437
        %v515 = vmul.f32 %v394, %v444
        %v516 = vmul.f32 %v395, %v448
        %v517 = vmul.f32 %v396, %v455
        %v518 = vmul.f32 %v397, %v459
        %v519 = vmul.f32 %v398, %v466
        %v520 = vmul.f32 %v399, %v470
        %v521 = vmul.f32 %v400, %v477
        %v522 = vmul.f32 %v401, %v481
        %v523 = vmul.f32 %v402, %v488
        %v524 = vmul.f32 %v403, %v492
        %v525 = vmul.f32 %v282, %v282
        %v526 = vmul.f32 %v283, %v283
        %v527 = vmul.f32 %v284, %v284
        %v528 = vmul.f32 %v285, %v285
        %v529 = vmul.f32 %v286, %v286
        %v530 = vmul.f32 %v287, %v287
        %v531 = vmul.f32 %v288, %v288
        %v532 = vmul.f32 %v289, %v289
        %v533 = vsel %vm307, %v525, 0.0
        %534 = vadd.xlane.f32.xlu0 %v533
        %v535 = vpop.xlane.xlu0 %534
        %v536 = vsel %vm307, %v526, 0.0
        %537 = vadd.xlane.f32.xlu0 %v536
        %v538 = vpop.xlane.xlu0 %537
        %v539 = vsel %vm307, %v527, 0.0
        %540 = vadd.xlane.f32.xlu0 %v539
        %v541 = vpop.xlane.xlu0 %540
        %v542 = vsel %vm307, %v528, 0.0
        %543 = vadd.xlane.f32.xlu0 %v542
        %v544 = vpop.xlane.xlu0 %543
        %v545 = vsel %vm307, %v529, 0.0
        %546 = vadd.xlane.f32.xlu0 %v545
        %v547 = vpop.xlane.xlu0 %546
        %v548 = vsel %vm307, %v530, 0.0
        %549 = vadd.xlane.f32.xlu0 %v548
        %v550 = vpop.xlane.xlu0 %549
        %v551 = vsel %vm307, %v531, 0.0
        %552 = vadd.xlane.f32.xlu0 %v551
        %v553 = vpop.xlane.xlu0 %552
        %v554 = vsel %vm307, %v532, 0.0
        %555 = vadd.xlane.f32.xlu0 %v554
        %v556 = vpop.xlane.xlu0 %555
        %vm557 = vcmp.gt.f32.partialorder %v535, 0.0
        %vm558 = vcmp.gt.f32.partialorder %v538, 0.0
        %vm559 = vcmp.gt.f32.partialorder %v541, 0.0
        %vm560 = vcmp.gt.f32.partialorder %v544, 0.0
        %vm561 = vcmp.gt.f32.partialorder %v547, 0.0
        %vm562 = vcmp.gt.f32.partialorder %v550, 0.0
        %vm563 = vcmp.gt.f32.partialorder %v553, 0.0
        %vm564 = vcmp.gt.f32.partialorder %v556, 0.0
        %v565 = vrsqrt.pop %v535
        %v566 = vrsqrt.pop %v538
        %v567 = vrsqrt.pop %v541
        %v568 = vrsqrt.pop %v544
        %v569 = vrsqrt.pop %v547
        %v570 = vrsqrt.pop %v550
        %v571 = vrsqrt.pop %v553
        %v572 = vrsqrt.pop %v556
        %v573 = vsel %vm557, %v565, 0.0
        %v574 = vsel %vm558, %v566, 0.0
        %v575 = vsel %vm559, %v567, 0.0
        %v576 = vsel %vm560, %v568, 0.0
        %v577 = vsel %vm561, %v569, 0.0
        %v578 = vsel %vm562, %v570, 0.0
        %v579 = vsel %vm563, %v571, 0.0
        %v580 = vsel %vm564, %v572, 0.0
        %583 = vset.pattern.permute.xlu0 0
        %584 = vperm.xlu0 %583, %v509
        %v585 = vpop.permute.xlu0 %584
        %586 = vset.pattern.permute.xlu0 0
        %587 = vperm.xlu0 %586, %v510
        %v588 = vpop.permute.xlu0 %587
        %v589 = vlaneseq
        %v590 = vand.u32 %v589, 127
        %v591 = vlaneseq
        %v592 = vshrl.u32 %v591, 7
        %v593 = vsub.s32 %v590, %v592
        %v594 = vrot.slane %v585, %v593
        %v595 = vadd.s32 %v590, 4294967288
        %v596 = vlaneseq
        %v597 = vshrl.u32 %v596, 7
        %v598 = vsub.s32 %v595, %v597
        %v599 = vrot.slane %v588, %v598
        %vm600 = vcmask 130112
        %v601 = vsel %vm600, %v599, %v594
        %vm602 = vcmask 130048
        %v603 = vsel %vm602, %v601, 0
        %605 = vmatprep.subr.mxu0 0.0
        %606 = vmatpush1.msra.mxu0 0.0
        %607 = vmatprep.subr.mxu0 0.0
        %608 = vmatpush1.msra.mxu0 0.0
        %609 = vmatprep.subr.mxu0 0.0
        %610 = vmatpush1.msra.mxu0 0.0
        %611 = vmatprep.subr.mxu0 0.0
        %612 = vmatpush1.msra.mxu0 0.0
        %613 = vmatprep.subr.mxu0 0.0
        %614 = vmatpush1.msra.mxu0 0.0
        %615 = vmatprep.subr.mxu0 0.0
        %616 = vmatpush1.msra.mxu0 0.0
        %617 = vmatprep.subr.mxu0 0.0
        %618 = vmatpush1.msra.mxu0 0.0
        %619 = vmatprep.subr.mxu0 0.0
        %620 = vmatpush1.msra.mxu0 0.0
        %621 = vmatprep.subr.mxu0 0.0
        %622 = vmatpush1.msra.mxu0 0.0
        %623 = vmatprep.subr.mxu0 0.0
        %624 = vmatpush1.msra.mxu0 0.0
        %625 = vmatprep.subr.mxu0 0.0
        %626 = vmatpush1.msra.mxu0 0.0
        %627 = vmatprep.subr.mxu0 0.0
        %628 = vmatpush1.msra.mxu0 0.0
        %629 = vmatprep.subr.mxu0 0.0
        %630 = vmatpush1.msra.mxu0 0.0
        %631 = vmatprep.subr.mxu0 0.0
        %632 = vmatpush1.msra.mxu0 0.0
        %633 = vmatprep.subr.mxu0 0.0
        %634 = vmatpush1.msra.mxu0 %v267
        %635 = vmatprep.subr.mxu0 0.0
        %636 = vmatpush1.msra.mxu0 %v266
        %637 = vmatprep.subr.mxu0 0.0
        %638 = vmatpush2.msra.mxu0 0.0
        %639 = vmatprep.subr.mxu0 0.0
        %640 = vmatpush2.msra.mxu0 0.0
        %641 = vmatprep.subr.mxu0 0.0
        %642 = vmatpush2.msra.mxu0 0.0
        %643 = vmatprep.subr.mxu0 0.0
        %644 = vmatpush2.msra.mxu0 0.0
        %645 = vmatprep.subr.mxu0 0.0
        %646 = vmatpush2.msra.mxu0 0.0
        %647 = vmatprep.subr.mxu0 0.0
        %648 = vmatpush2.msra.mxu0 0.0
        %649 = vmatprep.subr.mxu0 0.0
        %650 = vmatpush2.msra.mxu0 0.0
        %651 = vmatprep.subr.mxu0 0.0
        %652 = vmatpush2.msra.mxu0 0.0
        %653 = vmatprep.subr.mxu0 0.0
        %654 = vmatpush2.msra.mxu0 0.0
        %655 = vmatprep.subr.mxu0 0.0
        %656 = vmatpush2.msra.mxu0 0.0
        %657 = vmatprep.subr.mxu0 0.0
        %658 = vmatpush2.msra.mxu0 0.0
        %659 = vmatprep.subr.mxu0 0.0
        %660 = vmatpush2.msra.mxu0 0.0
        %661 = vmatprep.subr.mxu0 0.0
        %662 = vmatpush2.msra.mxu0 0.0
        %663 = vmatprep.subr.mxu0 0.0
        %664 = vmatpush2.msra.mxu0 0.0
        %665 = vmatprep.subr.mxu0 0.0
        %666 = vmatpush2.msra.mxu0 0.0
        %667 = vmatprep.subr.mxu0 0.0
        %668 = vmatpush2.msra.mxu0 0.0
        %669 = vmatprep.mubr.f32.mxu0 0.0
        %670 = vmatmul.mubr.f32.gmra.mxu0 %v603
        %v671 = vpop.f32.mrf.mxu0
        %v672 = vadd.f32 0.0, %v671
        %v673 = vpop.f32.mrf.mxu0
        %674 = vdwg.mxu0
        %677 = vset.pattern.permute.xlu0 0
        %678 = vperm.xlu0 %677, %v511
        %v679 = vpop.permute.xlu0 %678
        %680 = vset.pattern.permute.xlu0 0
        %681 = vperm.xlu0 %680, %v512
        %v682 = vpop.permute.xlu0 %681
        %v683 = vlaneseq
        %v684 = vshrl.u32 %v683, 7
        %v685 = vsub.s32 %v590, %v684
        %v686 = vrot.slane %v679, %v685
        %v687 = vlaneseq
        %v688 = vshrl.u32 %v687, 7
        %v689 = vsub.s32 %v595, %v688
        %v690 = vrot.slane %v682, %v689
        %v691 = vsel %vm600, %v690, %v686
        %v692 = vsel %vm602, %v691, 0
        %694 = vmatprep.subr.mxu0 0.0
        %695 = vmatpush1.msra.mxu0 0.0
        %696 = vmatprep.subr.mxu0 0.0
        %697 = vmatpush1.msra.mxu0 0.0
        %698 = vmatprep.subr.mxu0 0.0
        %699 = vmatpush1.msra.mxu0 0.0
        %700 = vmatprep.subr.mxu0 0.0
        %701 = vmatpush1.msra.mxu0 0.0
        %702 = vmatprep.subr.mxu0 0.0
        %703 = vmatpush1.msra.mxu0 0.0
        %704 = vmatprep.subr.mxu0 0.0
        %705 = vmatpush1.msra.mxu0 0.0
        %706 = vmatprep.subr.mxu0 0.0
        %707 = vmatpush1.msra.mxu0 0.0
        %708 = vmatprep.subr.mxu0 0.0
        %709 = vmatpush1.msra.mxu0 0.0
        %710 = vmatprep.subr.mxu0 0.0
        %711 = vmatpush1.msra.mxu0 0.0
        %712 = vmatprep.subr.mxu0 0.0
        %713 = vmatpush1.msra.mxu0 0.0
        %714 = vmatprep.subr.mxu0 0.0
        %715 = vmatpush1.msra.mxu0 0.0
        %716 = vmatprep.subr.mxu0 0.0
        %717 = vmatpush1.msra.mxu0 0.0
        %718 = vmatprep.subr.mxu0 0.0
        %719 = vmatpush1.msra.mxu0 0.0
        %720 = vmatprep.subr.mxu0 0.0
        %721 = vmatpush1.msra.mxu0 0.0
        %722 = vmatprep.subr.mxu0 0.0
        %723 = vmatpush1.msra.mxu0 %v269
        %724 = vmatprep.subr.mxu0 0.0
        %725 = vmatpush1.msra.mxu0 %v268
        %726 = vmatprep.subr.mxu0 0.0
        %727 = vmatpush2.msra.mxu0 0.0
        %728 = vmatprep.subr.mxu0 0.0
        %729 = vmatpush2.msra.mxu0 0.0
        %730 = vmatprep.subr.mxu0 0.0
        %731 = vmatpush2.msra.mxu0 0.0
        %732 = vmatprep.subr.mxu0 0.0
        %733 = vmatpush2.msra.mxu0 0.0
        %734 = vmatprep.subr.mxu0 0.0
        %735 = vmatpush2.msra.mxu0 0.0
        %736 = vmatprep.subr.mxu0 0.0
        %737 = vmatpush2.msra.mxu0 0.0
        %738 = vmatprep.subr.mxu0 0.0
        %739 = vmatpush2.msra.mxu0 0.0
        %740 = vmatprep.subr.mxu0 0.0
        %741 = vmatpush2.msra.mxu0 0.0
        %742 = vmatprep.subr.mxu0 0.0
        %743 = vmatpush2.msra.mxu0 0.0
        %744 = vmatprep.subr.mxu0 0.0
        %745 = vmatpush2.msra.mxu0 0.0
        %746 = vmatprep.subr.mxu0 0.0
        %747 = vmatpush2.msra.mxu0 0.0
        %748 = vmatprep.subr.mxu0 0.0
        %749 = vmatpush2.msra.mxu0 0.0
        %750 = vmatprep.subr.mxu0 0.0
        %751 = vmatpush2.msra.mxu0 0.0
        %752 = vmatprep.subr.mxu0 0.0
        %753 = vmatpush2.msra.mxu0 0.0
        %754 = vmatprep.subr.mxu0 0.0
        %755 = vmatpush2.msra.mxu0 0.0
        %756 = vmatprep.subr.mxu0 0.0
        %757 = vmatpush2.msra.mxu0 0.0
        %758 = vmatprep.mubr.f32.mxu0 0.0
        %759 = vmatmul.mubr.f32.gmra.mxu0 %v692
        %v760 = vpop.f32.mrf.mxu0
        %v761 = vadd.f32 0.0, %v760
        %v762 = vpop.f32.mrf.mxu0
        %763 = vdwg.mxu0
        %766 = vset.pattern.permute.xlu0 0
        %767 = vperm.xlu0 %766, %v513
        %v768 = vpop.permute.xlu0 %767
        %769 = vset.pattern.permute.xlu0 0
        %770 = vperm.xlu0 %769, %v514
        %v771 = vpop.permute.xlu0 %770
        %v772 = vlaneseq
        %v773 = vshrl.u32 %v772, 7
        %v774 = vsub.s32 %v590, %v773
        %v775 = vrot.slane %v768, %v774
        %v776 = vlaneseq
        %v777 = vshrl.u32 %v776, 7
        %v778 = vsub.s32 %v595, %v777
        %v779 = vrot.slane %v771, %v778
        %v780 = vsel %vm600, %v779, %v775
        %v781 = vsel %vm602, %v780, 0
        %783 = vmatprep.subr.mxu0 0.0
        %784 = vmatpush1.msra.mxu0 0.0
        %785 = vmatprep.subr.mxu0 0.0
        %786 = vmatpush1.msra.mxu0 0.0
        %787 = vmatprep.subr.mxu0 0.0
        %788 = vmatpush1.msra.mxu0 0.0
        %789 = vmatprep.subr.mxu0 0.0
        %790 = vmatpush1.msra.mxu0 0.0
        %791 = vmatprep.subr.mxu0 0.0
        %792 = vmatpush1.msra.mxu0 0.0
        %793 = vmatprep.subr.mxu0 0.0
        %794 = vmatpush1.msra.mxu0 0.0
        %795 = vmatprep.subr.mxu0 0.0
        %796 = vmatpush1.msra.mxu0 0.0
        %797 = vmatprep.subr.mxu0 0.0
        %798 = vmatpush1.msra.mxu0 0.0
        %799 = vmatprep.subr.mxu0 0.0
        %800 = vmatpush1.msra.mxu0 0.0
        %801 = vmatprep.subr.mxu0 0.0
        %802 = vmatpush1.msra.mxu0 0.0
        %803 = vmatprep.subr.mxu0 0.0
        %804 = vmatpush1.msra.mxu0 0.0
        %805 = vmatprep.subr.mxu0 0.0
        %806 = vmatpush1.msra.mxu0 0.0
        %807 = vmatprep.subr.mxu0 0.0
        %808 = vmatpush1.msra.mxu0 0.0
        %809 = vmatprep.subr.mxu0 0.0
        %810 = vmatpush1.msra.mxu0 0.0
        %811 = vmatprep.subr.mxu0 0.0
        %812 = vmatpush1.msra.mxu0 %v271
        %813 = vmatprep.subr.mxu0 0.0
        %814 = vmatpush1.msra.mxu0 %v270
        %815 = vmatprep.subr.mxu0 0.0
        %816 = vmatpush2.msra.mxu0 0.0
        %817 = vmatprep.subr.mxu0 0.0
        %818 = vmatpush2.msra.mxu0 0.0
        %819 = vmatprep.subr.mxu0 0.0
        %820 = vmatpush2.msra.mxu0 0.0
        %821 = vmatprep.subr.mxu0 0.0
        %822 = vmatpush2.msra.mxu0 0.0
        %823 = vmatprep.subr.mxu0 0.0
        %824 = vmatpush2.msra.mxu0 0.0
        %825 = vmatprep.subr.mxu0 0.0
        %826 = vmatpush2.msra.mxu0 0.0
        %827 = vmatprep.subr.mxu0 0.0
        %828 = vmatpush2.msra.mxu0 0.0
        %829 = vmatprep.subr.mxu0 0.0
        %830 = vmatpush2.msra.mxu0 0.0
        %831 = vmatprep.subr.mxu0 0.0
        %832 = vmatpush2.msra.mxu0 0.0
        %833 = vmatprep.subr.mxu0 0.0
        %834 = vmatpush2.msra.mxu0 0.0
        %835 = vmatprep.subr.mxu0 0.0
        %836 = vmatpush2.msra.mxu0 0.0
        %837 = vmatprep.subr.mxu0 0.0
        %838 = vmatpush2.msra.mxu0 0.0
        %839 = vmatprep.subr.mxu0 0.0
        %840 = vmatpush2.msra.mxu0 0.0
        %841 = vmatprep.subr.mxu0 0.0
        %842 = vmatpush2.msra.mxu0 0.0
        %843 = vmatprep.subr.mxu0 0.0
        %844 = vmatpush2.msra.mxu0 0.0
        %845 = vmatprep.subr.mxu0 0.0
        %846 = vmatpush2.msra.mxu0 0.0
        %847 = vmatprep.mubr.f32.mxu0 0.0
        %848 = vmatmul.mubr.f32.gmra.mxu0 %v781
        %v849 = vpop.f32.mrf.mxu0
        %v850 = vadd.f32 0.0, %v849
        %v851 = vpop.f32.mrf.mxu0
        %852 = vdwg.mxu0
        %855 = vset.pattern.permute.xlu0 0
        %856 = vperm.xlu0 %855, %v515
        %v857 = vpop.permute.xlu0 %856
        %858 = vset.pattern.permute.xlu0 0
        %859 = vperm.xlu0 %858, %v516
        %v860 = vpop.permute.xlu0 %859
        %v861 = vlaneseq
        %v862 = vshrl.u32 %v861, 7
        %v863 = vsub.s32 %v590, %v862
        %v864 = vrot.slane %v857, %v863
        %v865 = vlaneseq
        %v866 = vshrl.u32 %v865, 7
        %v867 = vsub.s32 %v595, %v866
        %v868 = vrot.slane %v860, %v867
        %v869 = vsel %vm600, %v868, %v864
        %v870 = vsel %vm602, %v869, 0
        %872 = vmatprep.subr.mxu0 0.0
        %873 = vmatpush1.msra.mxu0 0.0
        %874 = vmatprep.subr.mxu0 0.0
        %875 = vmatpush1.msra.mxu0 0.0
        %876 = vmatprep.subr.mxu0 0.0
        %877 = vmatpush1.msra.mxu0 0.0
        %878 = vmatprep.subr.mxu0 0.0
        %879 = vmatpush1.msra.mxu0 0.0
        %880 = vmatprep.subr.mxu0 0.0
        %881 = vmatpush1.msra.mxu0 0.0
        %882 = vmatprep.subr.mxu0 0.0
        %883 = vmatpush1.msra.mxu0 0.0
        %884 = vmatprep.subr.mxu0 0.0
        %885 = vmatpush1.msra.mxu0 0.0
        %886 = vmatprep.subr.mxu0 0.0
        %887 = vmatpush1.msra.mxu0 0.0
        %888 = vmatprep.subr.mxu0 0.0
        %889 = vmatpush1.msra.mxu0 0.0
        %890 = vmatprep.subr.mxu0 0.0
        %891 = vmatpush1.msra.mxu0 0.0
        %892 = vmatprep.subr.mxu0 0.0
        %893 = vmatpush1.msra.mxu0 0.0
        %894 = vmatprep.subr.mxu0 0.0
        %895 = vmatpush1.msra.mxu0 0.0
        %896 = vmatprep.subr.mxu0 0.0
        %897 = vmatpush1.msra.mxu0 0.0
        %898 = vmatprep.subr.mxu0 0.0
        %899 = vmatpush1.msra.mxu0 0.0
        %900 = vmatprep.subr.mxu0 0.0
        %901 = vmatpush1.msra.mxu0 %v273
        %902 = vmatprep.subr.mxu0 0.0
        %903 = vmatpush1.msra.mxu0 %v272
        %904 = vmatprep.subr.mxu0 0.0
        %905 = vmatpush2.msra.mxu0 0.0
        %906 = vmatprep.subr.mxu0 0.0
        %907 = vmatpush2.msra.mxu0 0.0
        %908 = vmatprep.subr.mxu0 0.0
        %909 = vmatpush2.msra.mxu0 0.0
        %910 = vmatprep.subr.mxu0 0.0
        %911 = vmatpush2.msra.mxu0 0.0
        %912 = vmatprep.subr.mxu0 0.0
        %913 = vmatpush2.msra.mxu0 0.0
        %914 = vmatprep.subr.mxu0 0.0
        %915 = vmatpush2.msra.mxu0 0.0
        %916 = vmatprep.subr.mxu0 0.0
        %917 = vmatpush2.msra.mxu0 0.0
        %918 = vmatprep.subr.mxu0 0.0
        %919 = vmatpush2.msra.mxu0 0.0
        %920 = vmatprep.subr.mxu0 0.0
        %921 = vmatpush2.msra.mxu0 0.0
        %922 = vmatprep.subr.mxu0 0.0
        %923 = vmatpush2.msra.mxu0 0.0
        %924 = vmatprep.subr.mxu0 0.0
        %925 = vmatpush2.msra.mxu0 0.0
        %926 = vmatprep.subr.mxu0 0.0
        %927 = vmatpush2.msra.mxu0 0.0
        %928 = vmatprep.subr.mxu0 0.0
        %929 = vmatpush2.msra.mxu0 0.0
        %930 = vmatprep.subr.mxu0 0.0
        %931 = vmatpush2.msra.mxu0 0.0
        %932 = vmatprep.subr.mxu0 0.0
        %933 = vmatpush2.msra.mxu0 0.0
        %934 = vmatprep.subr.mxu0 0.0
        %935 = vmatpush2.msra.mxu0 0.0
        %936 = vmatprep.mubr.f32.mxu0 0.0
        %937 = vmatmul.mubr.f32.gmra.mxu0 %v870
        %v938 = vpop.f32.mrf.mxu0
        %v939 = vadd.f32 0.0, %v938
        %v940 = vpop.f32.mrf.mxu0
        %941 = vdwg.mxu0
        %944 = vset.pattern.permute.xlu0 0
        %945 = vperm.xlu0 %944, %v517
        %v946 = vpop.permute.xlu0 %945
        %947 = vset.pattern.permute.xlu0 0
        %948 = vperm.xlu0 %947, %v518
        %v949 = vpop.permute.xlu0 %948
        %v950 = vlaneseq
        %v951 = vshrl.u32 %v950, 7
        %v952 = vsub.s32 %v590, %v951
        %v953 = vrot.slane %v946, %v952
        %v954 = vlaneseq
        %v955 = vshrl.u32 %v954, 7
        %v956 = vsub.s32 %v595, %v955
        %v957 = vrot.slane %v949, %v956
        %v958 = vsel %vm600, %v957, %v953
        %v959 = vsel %vm602, %v958, 0
        %961 = vmatprep.subr.mxu0 0.0
        %962 = vmatpush1.msra.mxu0 0.0
        %963 = vmatprep.subr.mxu0 0.0
        %964 = vmatpush1.msra.mxu0 0.0
        %965 = vmatprep.subr.mxu0 0.0
        %966 = vmatpush1.msra.mxu0 0.0
        %967 = vmatprep.subr.mxu0 0.0
        %968 = vmatpush1.msra.mxu0 0.0
        %969 = vmatprep.subr.mxu0 0.0
        %970 = vmatpush1.msra.mxu0 0.0
        %971 = vmatprep.subr.mxu0 0.0
        %972 = vmatpush1.msra.mxu0 0.0
        %973 = vmatprep.subr.mxu0 0.0
        %974 = vmatpush1.msra.mxu0 0.0
        %975 = vmatprep.subr.mxu0 0.0
        %976 = vmatpush1.msra.mxu0 0.0
        %977 = vmatprep.subr.mxu0 0.0
        %978 = vmatpush1.msra.mxu0 0.0
        %979 = vmatprep.subr.mxu0 0.0
        %980 = vmatpush1.msra.mxu0 0.0
        %981 = vmatprep.subr.mxu0 0.0
        %982 = vmatpush1.msra.mxu0 0.0
        %983 = vmatprep.subr.mxu0 0.0
        %984 = vmatpush1.msra.mxu0 0.0
        %985 = vmatprep.subr.mxu0 0.0
        %986 = vmatpush1.msra.mxu0 0.0
        %987 = vmatprep.subr.mxu0 0.0
        %988 = vmatpush1.msra.mxu0 0.0
        %989 = vmatprep.subr.mxu0 0.0
        %990 = vmatpush1.msra.mxu0 %v275
        %991 = vmatprep.subr.mxu0 0.0
        %992 = vmatpush1.msra.mxu0 %v274
        %993 = vmatprep.subr.mxu0 0.0
        %994 = vmatpush2.msra.mxu0 0.0
        %995 = vmatprep.subr.mxu0 0.0
        %996 = vmatpush2.msra.mxu0 0.0
        %997 = vmatprep.subr.mxu0 0.0
        %998 = vmatpush2.msra.mxu0 0.0
        %999 = vmatprep.subr.mxu0 0.0
        %1000 = vmatpush2.msra.mxu0 0.0
        %1001 = vmatprep.subr.mxu0 0.0
        %1002 = vmatpush2.msra.mxu0 0.0
        %1003 = vmatprep.subr.mxu0 0.0
        %1004 = vmatpush2.msra.mxu0 0.0
        %1005 = vmatprep.subr.mxu0 0.0
        %1006 = vmatpush2.msra.mxu0 0.0
        %1007 = vmatprep.subr.mxu0 0.0
        %1008 = vmatpush2.msra.mxu0 0.0
        %1009 = vmatprep.subr.mxu0 0.0
        %1010 = vmatpush2.msra.mxu0 0.0
        %1011 = vmatprep.subr.mxu0 0.0
        %1012 = vmatpush2.msra.mxu0 0.0
        %1013 = vmatprep.subr.mxu0 0.0
        %1014 = vmatpush2.msra.mxu0 0.0
        %1015 = vmatprep.subr.mxu0 0.0
        %1016 = vmatpush2.msra.mxu0 0.0
        %1017 = vmatprep.subr.mxu0 0.0
        %1018 = vmatpush2.msra.mxu0 0.0
        %1019 = vmatprep.subr.mxu0 0.0
        %1020 = vmatpush2.msra.mxu0 0.0
        %1021 = vmatprep.subr.mxu0 0.0
        %1022 = vmatpush2.msra.mxu0 0.0
        %1023 = vmatprep.subr.mxu0 0.0
        %1024 = vmatpush2.msra.mxu0 0.0
        %1025 = vmatprep.mubr.f32.mxu0 0.0
        %1026 = vmatmul.mubr.f32.gmra.mxu0 %v959
        %v1027 = vpop.f32.mrf.mxu0
        %v1028 = vadd.f32 0.0, %v1027
        %v1029 = vpop.f32.mrf.mxu0
        %1030 = vdwg.mxu0
        %1033 = vset.pattern.permute.xlu0 0
        %1034 = vperm.xlu0 %1033, %v519
        %v1035 = vpop.permute.xlu0 %1034
        %1036 = vset.pattern.permute.xlu0 0
        %1037 = vperm.xlu0 %1036, %v520
        %v1038 = vpop.permute.xlu0 %1037
        %v1039 = vlaneseq
        %v1040 = vshrl.u32 %v1039, 7
        %v1041 = vsub.s32 %v590, %v1040
        %v1042 = vrot.slane %v1035, %v1041
        %v1043 = vlaneseq
        %v1044 = vshrl.u32 %v1043, 7
        %v1045 = vsub.s32 %v595, %v1044
        %v1046 = vrot.slane %v1038, %v1045
        %v1047 = vsel %vm600, %v1046, %v1042
        %v1048 = vsel %vm602, %v1047, 0
        %1050 = vmatprep.subr.mxu0 0.0
        %1051 = vmatpush1.msra.mxu0 0.0
        %1052 = vmatprep.subr.mxu0 0.0
        %1053 = vmatpush1.msra.mxu0 0.0
        %1054 = vmatprep.subr.mxu0 0.0
        %1055 = vmatpush1.msra.mxu0 0.0
        %1056 = vmatprep.subr.mxu0 0.0
        %1057 = vmatpush1.msra.mxu0 0.0
        %1058 = vmatprep.subr.mxu0 0.0
        %1059 = vmatpush1.msra.mxu0 0.0
        %1060 = vmatprep.subr.mxu0 0.0
        %1061 = vmatpush1.msra.mxu0 0.0
        %1062 = vmatprep.subr.mxu0 0.0
        %1063 = vmatpush1.msra.mxu0 0.0
        %1064 = vmatprep.subr.mxu0 0.0
        %1065 = vmatpush1.msra.mxu0 0.0
        %1066 = vmatprep.subr.mxu0 0.0
        %1067 = vmatpush1.msra.mxu0 0.0
        %1068 = vmatprep.subr.mxu0 0.0
        %1069 = vmatpush1.msra.mxu0 0.0
        %1070 = vmatprep.subr.mxu0 0.0
        %1071 = vmatpush1.msra.mxu0 0.0
        %1072 = vmatprep.subr.mxu0 0.0
        %1073 = vmatpush1.msra.mxu0 0.0
        %1074 = vmatprep.subr.mxu0 0.0
        %1075 = vmatpush1.msra.mxu0 0.0
        %1076 = vmatprep.subr.mxu0 0.0
        %1077 = vmatpush1.msra.mxu0 0.0
        %1078 = vmatprep.subr.mxu0 0.0
        %1079 = vmatpush1.msra.mxu0 %v277
        %1080 = vmatprep.subr.mxu0 0.0
        %1081 = vmatpush1.msra.mxu0 %v276
        %1082 = vmatprep.subr.mxu0 0.0
        %1083 = vmatpush2.msra.mxu0 0.0
        %1084 = vmatprep.subr.mxu0 0.0
        %1085 = vmatpush2.msra.mxu0 0.0
        %1086 = vmatprep.subr.mxu0 0.0
        %1087 = vmatpush2.msra.mxu0 0.0
        %1088 = vmatprep.subr.mxu0 0.0
        %1089 = vmatpush2.msra.mxu0 0.0
        %1090 = vmatprep.subr.mxu0 0.0
        %1091 = vmatpush2.msra.mxu0 0.0
        %1092 = vmatprep.subr.mxu0 0.0
        %1093 = vmatpush2.msra.mxu0 0.0
        %1094 = vmatprep.subr.mxu0 0.0
        %1095 = vmatpush2.msra.mxu0 0.0
        %1096 = vmatprep.subr.mxu0 0.0
        %1097 = vmatpush2.msra.mxu0 0.0
        %1098 = vmatprep.subr.mxu0 0.0
        %1099 = vmatpush2.msra.mxu0 0.0
        %1100 = vmatprep.subr.mxu0 0.0
        %1101 = vmatpush2.msra.mxu0 0.0
        %1102 = vmatprep.subr.mxu0 0.0
        %1103 = vmatpush2.msra.mxu0 0.0
        %1104 = vmatprep.subr.mxu0 0.0
        %1105 = vmatpush2.msra.mxu0 0.0
        %1106 = vmatprep.subr.mxu0 0.0
        %1107 = vmatpush2.msra.mxu0 0.0
        %1108 = vmatprep.subr.mxu0 0.0
        %1109 = vmatpush2.msra.mxu0 0.0
        %1110 = vmatprep.subr.mxu0 0.0
        %1111 = vmatpush2.msra.mxu0 0.0
        %1112 = vmatprep.subr.mxu0 0.0
        %1113 = vmatpush2.msra.mxu0 0.0
        %1114 = vmatprep.mubr.f32.mxu0 0.0
        %1115 = vmatmul.mubr.f32.gmra.mxu0 %v1048
        %v1116 = vpop.f32.mrf.mxu0
        %v1117 = vadd.f32 0.0, %v1116
        %v1118 = vpop.f32.mrf.mxu0
        %1119 = vdwg.mxu0
        %1122 = vset.pattern.permute.xlu0 0
        %1123 = vperm.xlu0 %1122, %v521
        %v1124 = vpop.permute.xlu0 %1123
        %1125 = vset.pattern.permute.xlu0 0
        %1126 = vperm.xlu0 %1125, %v522
        %v1127 = vpop.permute.xlu0 %1126
        %v1128 = vlaneseq
        %v1129 = vshrl.u32 %v1128, 7
        %v1130 = vsub.s32 %v590, %v1129
        %v1131 = vrot.slane %v1124, %v1130
        %v1132 = vlaneseq
        %v1133 = vshrl.u32 %v1132, 7
        %v1134 = vsub.s32 %v595, %v1133
        %v1135 = vrot.slane %v1127, %v1134
        %v1136 = vsel %vm600, %v1135, %v1131
        %v1137 = vsel %vm602, %v1136, 0
        %1139 = vmatprep.subr.mxu0 0.0
        %1140 = vmatpush1.msra.mxu0 0.0
        %1141 = vmatprep.subr.mxu0 0.0
        %1142 = vmatpush1.msra.mxu0 0.0
        %1143 = vmatprep.subr.mxu0 0.0
        %1144 = vmatpush1.msra.mxu0 0.0
        %1145 = vmatprep.subr.mxu0 0.0
        %1146 = vmatpush1.msra.mxu0 0.0
        %1147 = vmatprep.subr.mxu0 0.0
        %1148 = vmatpush1.msra.mxu0 0.0
        %1149 = vmatprep.subr.mxu0 0.0
        %1150 = vmatpush1.msra.mxu0 0.0
        %1151 = vmatprep.subr.mxu0 0.0
        %1152 = vmatpush1.msra.mxu0 0.0
        %1153 = vmatprep.subr.mxu0 0.0
        %1154 = vmatpush1.msra.mxu0 0.0
        %1155 = vmatprep.subr.mxu0 0.0
        %1156 = vmatpush1.msra.mxu0 0.0
        %1157 = vmatprep.subr.mxu0 0.0
        %1158 = vmatpush1.msra.mxu0 0.0
        %1159 = vmatprep.subr.mxu0 0.0
        %1160 = vmatpush1.msra.mxu0 0.0
        %1161 = vmatprep.subr.mxu0 0.0
        %1162 = vmatpush1.msra.mxu0 0.0
        %1163 = vmatprep.subr.mxu0 0.0
        %1164 = vmatpush1.msra.mxu0 0.0
        %1165 = vmatprep.subr.mxu0 0.0
        %1166 = vmatpush1.msra.mxu0 0.0
        %1167 = vmatprep.subr.mxu0 0.0
        %1168 = vmatpush1.msra.mxu0 %v279
        %1169 = vmatprep.subr.mxu0 0.0
        %1170 = vmatpush1.msra.mxu0 %v278
        %1171 = vmatprep.subr.mxu0 0.0
        %1172 = vmatpush2.msra.mxu0 0.0
        %1173 = vmatprep.subr.mxu0 0.0
        %1174 = vmatpush2.msra.mxu0 0.0
        %1175 = vmatprep.subr.mxu0 0.0
        %1176 = vmatpush2.msra.mxu0 0.0
        %1177 = vmatprep.subr.mxu0 0.0
        %1178 = vmatpush2.msra.mxu0 0.0
        %1179 = vmatprep.subr.mxu0 0.0
        %1180 = vmatpush2.msra.mxu0 0.0
        %1181 = vmatprep.subr.mxu0 0.0
        %1182 = vmatpush2.msra.mxu0 0.0
        %1183 = vmatprep.subr.mxu0 0.0
        %1184 = vmatpush2.msra.mxu0 0.0
        %1185 = vmatprep.subr.mxu0 0.0
        %1186 = vmatpush2.msra.mxu0 0.0
        %1187 = vmatprep.subr.mxu0 0.0
        %1188 = vmatpush2.msra.mxu0 0.0
        %1189 = vmatprep.subr.mxu0 0.0
        %1190 = vmatpush2.msra.mxu0 0.0
        %1191 = vmatprep.subr.mxu0 0.0
        %1192 = vmatpush2.msra.mxu0 0.0
        %1193 = vmatprep.subr.mxu0 0.0
        %1194 = vmatpush2.msra.mxu0 0.0
        %1195 = vmatprep.subr.mxu0 0.0
        %1196 = vmatpush2.msra.mxu0 0.0
        %1197 = vmatprep.subr.mxu0 0.0
        %1198 = vmatpush2.msra.mxu0 0.0
        %1199 = vmatprep.subr.mxu0 0.0
        %1200 = vmatpush2.msra.mxu0 0.0
        %1201 = vmatprep.subr.mxu0 0.0
        %1202 = vmatpush2.msra.mxu0 0.0
        %1203 = vmatprep.mubr.f32.mxu0 0.0
        %1204 = vmatmul.mubr.f32.gmra.mxu0 %v1137
        %v1205 = vpop.f32.mrf.mxu0
        %v1206 = vadd.f32 0.0, %v1205
        %v1207 = vpop.f32.mrf.mxu0
        %1208 = vdwg.mxu0
        %1211 = vset.pattern.permute.xlu0 0
        %1212 = vperm.xlu0 %1211, %v523
        %v1213 = vpop.permute.xlu0 %1212
        %1214 = vset.pattern.permute.xlu0 0
        %1215 = vperm.xlu0 %1214, %v524
        %v1216 = vpop.permute.xlu0 %1215
        %v1217 = vlaneseq
        %v1218 = vshrl.u32 %v1217, 7
        %v1219 = vsub.s32 %v590, %v1218
        %v1220 = vrot.slane %v1213, %v1219
        %v1221 = vlaneseq
        %v1222 = vshrl.u32 %v1221, 7
        %v1223 = vsub.s32 %v595, %v1222
        %v1224 = vrot.slane %v1216, %v1223
        %v1225 = vsel %vm600, %v1224, %v1220
        %v1226 = vsel %vm602, %v1225, 0
        %1228 = vmatprep.subr.mxu0 0.0
        %1229 = vmatpush1.msra.mxu0 0.0
        %1230 = vmatprep.subr.mxu0 0.0
        %1231 = vmatpush1.msra.mxu0 0.0
        %1232 = vmatprep.subr.mxu0 0.0
        %1233 = vmatpush1.msra.mxu0 0.0
        %1234 = vmatprep.subr.mxu0 0.0
        %1235 = vmatpush1.msra.mxu0 0.0
        %1236 = vmatprep.subr.mxu0 0.0
        %1237 = vmatpush1.msra.mxu0 0.0
        %1238 = vmatprep.subr.mxu0 0.0
        %1239 = vmatpush1.msra.mxu0 0.0
        %1240 = vmatprep.subr.mxu0 0.0
        %1241 = vmatpush1.msra.mxu0 0.0
        %1242 = vmatprep.subr.mxu0 0.0
        %1243 = vmatpush1.msra.mxu0 0.0
        %1244 = vmatprep.subr.mxu0 0.0
        %1245 = vmatpush1.msra.mxu0 0.0
        %1246 = vmatprep.subr.mxu0 0.0
        %1247 = vmatpush1.msra.mxu0 0.0
        %1248 = vmatprep.subr.mxu0 0.0
        %1249 = vmatpush1.msra.mxu0 0.0
        %1250 = vmatprep.subr.mxu0 0.0
        %1251 = vmatpush1.msra.mxu0 0.0
        %1252 = vmatprep.subr.mxu0 0.0
        %1253 = vmatpush1.msra.mxu0 0.0
        %1254 = vmatprep.subr.mxu0 0.0
        %1255 = vmatpush1.msra.mxu0 0.0
        %1256 = vmatprep.subr.mxu0 0.0
        %1257 = vmatpush1.msra.mxu0 %v281
        %1258 = vmatprep.subr.mxu0 0.0
        %1259 = vmatpush1.msra.mxu0 %v280
        %1260 = vmatprep.subr.mxu0 0.0
        %1261 = vmatpush2.msra.mxu0 0.0
        %1262 = vmatprep.subr.mxu0 0.0
        %1263 = vmatpush2.msra.mxu0 0.0
        %1264 = vmatprep.subr.mxu0 0.0
        %1265 = vmatpush2.msra.mxu0 0.0
        %1266 = vmatprep.subr.mxu0 0.0
        %1267 = vmatpush2.msra.mxu0 0.0
        %1268 = vmatprep.subr.mxu0 0.0
        %1269 = vmatpush2.msra.mxu0 0.0
        %1270 = vmatprep.subr.mxu0 0.0
        %1271 = vmatpush2.msra.mxu0 0.0
        %1272 = vmatprep.subr.mxu0 0.0
        %1273 = vmatpush2.msra.mxu0 0.0
        %1274 = vmatprep.subr.mxu0 0.0
        %1275 = vmatpush2.msra.mxu0 0.0
        %1276 = vmatprep.subr.mxu0 0.0
        %1277 = vmatpush2.msra.mxu0 0.0
        %1278 = vmatprep.subr.mxu0 0.0
        %1279 = vmatpush2.msra.mxu0 0.0
        %1280 = vmatprep.subr.mxu0 0.0
        %1281 = vmatpush2.msra.mxu0 0.0
        %1282 = vmatprep.subr.mxu0 0.0
        %1283 = vmatpush2.msra.mxu0 0.0
        %1284 = vmatprep.subr.mxu0 0.0
        %1285 = vmatpush2.msra.mxu0 0.0
        %1286 = vmatprep.subr.mxu0 0.0
        %1287 = vmatpush2.msra.mxu0 0.0
        %1288 = vmatprep.subr.mxu0 0.0
        %1289 = vmatpush2.msra.mxu0 0.0
        %1290 = vmatprep.subr.mxu0 0.0
        %1291 = vmatpush2.msra.mxu0 0.0
        %1292 = vmatprep.mubr.f32.mxu0 0.0
        %1293 = vmatmul.mubr.f32.gmra.mxu0 %v1226
        %v1294 = vpop.f32.mrf.mxu0
        %v1295 = vadd.f32 0.0, %v1294
        %v1296 = vpop.f32.mrf.mxu0
        %1297 = vdwg.mxu0
        %v1298 = vmul.f32 %v282, %v573
        %v1299 = vmul.f32 %v283, %v574
        %v1300 = vmul.f32 %v284, %v575
        %v1301 = vmul.f32 %v285, %v576
        %v1302 = vmul.f32 %v286, %v577
        %v1303 = vmul.f32 %v287, %v578
        %v1304 = vmul.f32 %v288, %v579
        %v1305 = vmul.f32 %v289, %v580
        %v1306 = vlaneseq
        %v1307 = vshrl.u32 %v1306, 7
        %v1308 = vsub.s32 0, %v1307
        %v1309 = vrot.slane %v672, %v1308
        %v1310 = vlaneseq
        %v1311 = vshrl.u32 %v1310, 7
        %v1312 = vsub.s32 0, %v1311
        %v1313 = vrot.slane %v761, %v1312
        %v1314 = vlaneseq
        %v1315 = vshrl.u32 %v1314, 7
        %v1316 = vsub.s32 0, %v1315
        %v1317 = vrot.slane %v850, %v1316
        %v1318 = vlaneseq
        %v1319 = vshrl.u32 %v1318, 7
        %v1320 = vsub.s32 0, %v1319
        %v1321 = vrot.slane %v939, %v1320
        %v1322 = vlaneseq
        %v1323 = vshrl.u32 %v1322, 7
        %v1324 = vsub.s32 0, %v1323
        %v1325 = vrot.slane %v1028, %v1324
        %v1326 = vlaneseq
        %v1327 = vshrl.u32 %v1326, 7
        %v1328 = vsub.s32 0, %v1327
        %v1329 = vrot.slane %v1117, %v1328
        %v1330 = vlaneseq
        %v1331 = vshrl.u32 %v1330, 7
        %v1332 = vsub.s32 0, %v1331
        %v1333 = vrot.slane %v1206, %v1332
        %v1334 = vlaneseq
        %v1335 = vshrl.u32 %v1334, 7
        %v1336 = vsub.s32 0, %v1335
        %v1337 = vrot.slane %v1295, %v1336
        %v1338 = vmul.f32 %v1298, %v1309
        %v1339 = vmul.f32 %v1299, %v1313
        %v1340 = vmul.f32 %v1300, %v1317
        %v1341 = vmul.f32 %v1301, %v1321
        %v1342 = vmul.f32 %v1302, %v1325
        %v1343 = vmul.f32 %v1303, %v1329
        %v1344 = vmul.f32 %v1304, %v1333
        %v1345 = vmul.f32 %v1305, %v1337
        %v1346 = vsel %vm307, %v1338, 0.0
        %1347 = vadd.xlane.f32.xlu0 %v1346
        %v1348 = vpop.xlane.xlu0 %1347
        %v1349 = vsel %vm307, %v1339, 0.0
        %1350 = vadd.xlane.f32.xlu0 %v1349
        %v1351 = vpop.xlane.xlu0 %1350
        %v1352 = vsel %vm307, %v1340, 0.0
        %1353 = vadd.xlane.f32.xlu0 %v1352
        %v1354 = vpop.xlane.xlu0 %1353
        %v1355 = vsel %vm307, %v1341, 0.0
        %1356 = vadd.xlane.f32.xlu0 %v1355
        %v1357 = vpop.xlane.xlu0 %1356
        %v1358 = vsel %vm307, %v1342, 0.0
        %1359 = vadd.xlane.f32.xlu0 %v1358
        %v1360 = vpop.xlane.xlu0 %1359
        %v1361 = vsel %vm307, %v1343, 0.0
        %1362 = vadd.xlane.f32.xlu0 %v1361
        %v1363 = vpop.xlane.xlu0 %1362
        %v1364 = vsel %vm307, %v1344, 0.0
        %1365 = vadd.xlane.f32.xlu0 %v1364
        %v1366 = vpop.xlane.xlu0 %1365
        %v1367 = vsel %vm307, %v1345, 0.0
        %1368 = vadd.xlane.f32.xlu0 %v1367
        %v1369 = vpop.xlane.xlu0 %1368
        %v1378 = vlaneseq
        %v1379 = vshrl.u32 %v1378, 7
        %v1380 = vsub.s32 %v590, %v1379
        %v1381 = vrot.slane %v1348, %v1380
        %v1382 = vlaneseq
        %v1383 = vshrl.u32 %v1382, 7
        %v1384 = vsub.s32 %v590, %v1383
        %v1385 = vrot.slane %v1351, %v1384
        %v1386 = vlaneseq
        %v1387 = vshrl.u32 %v1386, 7
        %v1388 = vsub.s32 %v590, %v1387
        %v1389 = vrot.slane %v1354, %v1388
        %v1390 = vlaneseq
        %v1391 = vshrl.u32 %v1390, 7
        %v1392 = vsub.s32 %v590, %v1391
        %v1393 = vrot.slane %v1357, %v1392
        %v1394 = vlaneseq
        %v1395 = vshrl.u32 %v1394, 7
        %v1396 = vsub.s32 %v590, %v1395
        %v1397 = vrot.slane %v1360, %v1396
        %v1398 = vlaneseq
        %v1399 = vshrl.u32 %v1398, 7
        %v1400 = vsub.s32 %v590, %v1399
        %v1401 = vrot.slane %v1363, %v1400
        %v1402 = vlaneseq
        %v1403 = vshrl.u32 %v1402, 7
        %v1404 = vsub.s32 %v590, %v1403
        %v1405 = vrot.slane %v1366, %v1404
        %v1406 = vlaneseq
        %v1407 = vshrl.u32 %v1406, 7
        %v1408 = vsub.s32 %v590, %v1407
        %v1409 = vrot.slane %v1369, %v1408
        %vm1410 = vcmask 1041409
        %v1411 = vsel %vm1410, %v1385, %v1381
        %vm1412 = vcmask 1042434
        %v1413 = vsel %vm1412, %v1389, %v1411
        %vm1414 = vcmask 1043459
        %v1415 = vsel %vm1414, %v1393, %v1413
        %vm1416 = vcmask 1044484
        %v1417 = vsel %vm1416, %v1397, %v1415
        %vm1418 = vcmask 1045509
        %v1419 = vsel %vm1418, %v1401, %v1417
        %vm1420 = vcmask 1046534
        %v1421 = vsel %vm1420, %v1405, %v1419
        %vm1422 = vcmask 1047559
        %v1423 = vsel %vm1422, %v1409, %v1421
        %vm1425 = vcmask 64512
        %1426 = vst.msk [vmem:[%s265] sm:$0xff] %vm1425, %v1423
        %p1427 = scmp.lt.s32.totalorder %s20, 1
        %s1428 = scalar_select %p1427, %s20, 1
        %s1429 = smul.addr %s1428, 8
        %s1430 = scalar_lea.vmem %s3, %s1429
        // Predicated region
        $region45: #{tpu_custom_call.1} parent=31 // pred_check
          %p1431 = pneg %p116
        $region46: #{tpu_custom_call.1} parent=31 // pred_check_branch
          %1433 = sbr.rel (%p1431) target = $region48
        $region47: #{tpu_custom_call.1} parent=31 // pred_region
          _
        $region48: #{tpu_custom_call.1} parent=31 // pred_fallthru
          _
      $region32: #{tpu_custom_call.1} parent=5 // pred_fallthru
        _
      %p1434 = scmp.le.s32.totalorder 2, %s15
      // Predicated region
      $region49: #{tpu_custom_call.1} parent=5 // pred_check
        %p1435 = pneg %p1434
      $region50: #{tpu_custom_call.1} parent=5 // pred_check_branch
        %1437 = sbr.rel (%p1435) target = $region52
      $region51: #{tpu_custom_call.1} parent=5 // pred_region
        %s1438 = ssub.s32 %s15, 2
        // Predicated region
        $region53: #{tpu_custom_call.1} parent=51 // pred_check
          %p1439 = pneg %p122
        $region54: #{tpu_custom_call.1} parent=51 // pred_check_branch
          %1441 = sbr.rel (%p1439) target = $region56
        $region55: #{tpu_custom_call.1} parent=51 // pred_region
          %p1442 = scmp.lt.s32.totalorder %s21, 1
          %s1443 = scalar_select %p1442, %s21, 1
          %s1444 = smul.addr %s1443, 8
          %s1445 = scalar_lea.vmem %s3, %s1444
        $region56: #{tpu_custom_call.1} parent=51 // pred_fallthru
          _
      $region52: #{tpu_custom_call.1} parent=5 // pred_fallthru
        _
    $region6: #{tpu_custom_call.1} parent=1 // loop_footer
      %s19 = sadd.s32 1, %s15
    $region7: #{tpu_custom_call.1} parent=1 // loop_footer_branch
      %14 = sbr.rel target = $region3
    $region8: #{tpu_custom_call.1} parent=1 // loop_exit
      _
    %1446 = vsyncpa [#allocation3], 1
    %s1447 = scalar_lea.sflag [#allocation3], 1
    %1448 = vsyncpa %s1447, 1
    %1449 = vsyncpa [#allocation5], 1
    %s1450 = scalar_lea.sflag [#allocation5], 1
    %1451 = vsyncpa %s1450, 1

</llo_original>
